<compile_context>
chip_gen: v5e
topology: v5e:2x2
jax: 0.10.0
libtpu: 0.0.40
codegen_flags: <defaults>
</compile_context>

<pallas_src>
import functools

import jax
import jax.numpy as jnp
import numpy as np
from jax import lax
from jax.experimental import pallas as pl
from jax.experimental.pallas import tpu as pltpu

# ----------------------------- configuration ------------------------------
BATCH = 2
SEQ = 8
NUM_HEADS = 4
NUM_KV_HEADS = 2
HEAD_DIM = 8
HIDDEN = NUM_HEADS * HEAD_DIM          # 32
LATENT = NUM_KV_HEADS * HEAD_DIM       # 16
KV_GROUPS = NUM_HEADS // NUM_KV_HEADS  # 2
ROPE_HEAD = 1
COLLAPSE = 1
COS_DIM = 8                            # rotary dim of cos/sin (before ::collapse slicing)
SCALING = HEAD_DIM ** -0.5

COS_DIM_C = (COS_DIM + COLLAPSE - 1) // COLLAPSE   # cos dim after ::collapse
ROPE_DIM = COS_DIM_C * ROPE_HEAD                   # 8
ROPE_REP = ROPE_HEAD                               # rotate_half group count
ROT_DH = ROPE_DIM // ROPE_REP                      # rotate_half group size (8)
ROLL = ROT_DH // 2                                 # roll amount (4)

# Column layout of the fused projection output (lane-dense, padded to 128):
#   [ q_up head 0 .. head H-1 (LATENT each) | k (LATENT) | v (head-major, HIDDEN) | 0-pad ]
QKV_Q_COLS = NUM_HEADS * LATENT        # 64
QKV_K_OFF = QKV_Q_COLS                 # 64
QKV_V_OFF = QKV_K_OFF + LATENT         # 80
QKV_COLS = QKV_V_OFF + HIDDEN          # 112
QKV_PAD = 128                          # lane-dense padded width

assert QKV_COLS <= QKV_PAD
assert ROPE_DIM <= LATENT
assert QKV_K_OFF + ROPE_DIM + ROLL <= QKV_PAD      # rolls never wrap out of their block


# ------------------------------ fused Pallas kernel -----------------------------
def _fused_partial_rope_kernel(x_ref, wbig_ref, wo_ref, cos_ref, sinp_ref, sinm_ref,
                               o_ref, *, batch, seq, scaling):
    # Whole (flattened) batch in one invocation; everything stays in VMEM / vregs.
    x = x_ref[...]                                                       # (B*S, HIDDEN)

    # Fused (q_up | k | v) projection.  k_up/v_up absorption and the rope de-interleave
    # permutation are baked into the weight; columns [QKV_COLS, 128) are zero pad.
    qkv = jnp.dot(x, wbig_ref[...], preferred_element_type=jnp.float32)  # (B*S, 128)

    # Partial rope: rotate_half == within-group roll by +-dh/2 with a sign.  The sign
    # and the rope/nope/v/pad column masking live in the cos / sin_p / sin_m tables
    # (cos==1, sin==0 outside rope columns), the rolls ride the otherwise-idle XLU slot.
    rot_p = pltpu.roll(qkv, ROLL, 1)                 # rot_p[:, c] = qkv[:, c - dh//2]
    rot_m = pltpu.roll(qkv, QKV_PAD - ROLL, 1)       # rot_m[:, c] = qkv[:, c + dh//2]
    qkv = qkv * cos_ref[...] + rot_p * sinp_ref[...] + rot_m * sinm_ref[...]

    # Causal mask, shared across batch / heads.
    r = lax.broadcasted_iota(jnp.int32, (seq, seq), 0)
    c = lax.broadcasted_iota(jnp.int32, (seq, seq), 1)
    causal = (c <= r)[None]                                              # (1, S, S)

    wo = wo_ref[...]                                                     # (HIDDEN, 128)

    for b in range(batch):                                               # static unroll (B=2)
        qb = qkv[b * seq:(b + 1) * seq, :]                               # (S, 128) sublane slice
        k = qb[:, QKV_K_OFF:QKV_K_OFF + LATENT]                          # (S, LATENT)
        q3 = jnp.stack([qb[:, h * LATENT:(h + 1) * LATENT]
                        for h in range(NUM_HEADS)], axis=0)              # (H, S, LATENT)
        v3 = jnp.stack(
            [qb[:, QKV_V_OFF + h * HEAD_DIM:QKV_V_OFF + (h + 1) * HEAD_DIM]
             for h in range(NUM_HEADS)], axis=0)                         # (H, S, HEAD_DIM)
        k3 = jnp.broadcast_to(k[None], (NUM_HEADS, seq, LATENT))

        # Head-batched attention: back-to-back MXU work instead of interleaved tiny dots.
        scores = jnp.einsum("hqc,hkc->hqk", q3, k3,
                            preferred_element_type=jnp.float32) * scaling
        scores = jnp.where(causal, scores, -1e30)
        m = jnp.max(scores, axis=-1, keepdims=True)
        p = jnp.exp(scores - m)
        l = jnp.sum(p, axis=-1, keepdims=True)
        pv = jnp.einsum("hqk,hkd->hqd", p, v3, preferred_element_type=jnp.float32)
        pv = pv * pl.reciprocal(l, approx=True)                          # EUP; no VALU divide

        # o-projection accumulated per head: no lane-concat of the head outputs.
        o_b = jnp.dot(pv[0], wo[:HEAD_DIM, :], preferred_element_type=jnp.float32)
        for h in range(1, NUM_HEADS):
            o_b = o_b + jnp.dot(pv[h], wo[h * HEAD_DIM:(h + 1) * HEAD_DIM, :],
                                preferred_element_type=jnp.float32)
        o_ref[b * seq:(b + 1) * seq, :] = o_b.astype(o_ref.dtype)        # unmasked 128-lane store


def partial_rope_forward(hidden, prep, rope):
    b, s, _ = hidden.shape
    x2 = hidden.reshape(b * s, HIDDEN)                      # free reshape (contiguous)
    kern = functools.partial(_fused_partial_rope_kernel, batch=b, seq=s, scaling=SCALING)
    out = pl.pallas_call(
        kern,
        out_shape=jax.ShapeDtypeStruct((b * s, QKV_PAD), jnp.float32),
        grid=(1,),                                           # whole problem fits VMEM
        in_specs=[
            pl.BlockSpec((b * s, HIDDEN), lambda i: (0, 0)),   # hidden (flattened rows)
            pl.BlockSpec((HIDDEN, QKV_PAD), lambda i: (0, 0)),  # fused qkv weight
            pl.BlockSpec((HIDDEN, QKV_PAD), lambda i: (0, 0)),  # o_proj weight (pre-T, padded)
            pl.BlockSpec((b * s, QKV_PAD), lambda i: (0, 0)),   # cos table
            pl.BlockSpec((b * s, QKV_PAD), lambda i: (0, 0)),   # +sin table (2nd halves)
            pl.BlockSpec((b * s, QKV_PAD), lambda i: (0, 0)),   # -sin table (1st halves)
        ],
        out_specs=pl.BlockSpec((b * s, QKV_PAD), lambda i: (0, 0)),
        compiler_params=pltpu.CompilerParams(
            dimension_semantics=("arbitrary",),
        ),
    )(x2, prep["W_big_T"], prep["Wo_T"], rope["cos"], rope["sin_p"], rope["sin_m"])
    # Slice off the lane padding of the lane-dense slab and restore (B, S, HIDDEN).
    return out[:, :HIDDEN].reshape(b, s, HIDDEN).astype(hidden.dtype)


# ------------------------ static weight pre-composition (init time) ------------------------
def prepare_weights(params):
    """Host-side, once-per-model weight composition (f64 for exactness, cast to f32)."""
    Wq = np.asarray(params["Wq"], np.float64)        # (H*dh, HIDDEN)
    Wk = np.asarray(params["Wk"], np.float64)        # (LATENT, HIDDEN)
    Wv = np.asarray(params["Wv"], np.float64)        # (LATENT, HIDDEN)
    Wo = np.asarray(params["Wo"], np.float64)        # (HIDDEN, H*dh)
    k_up = np.asarray(params["Wk_up"], np.float64).reshape(NUM_HEADS, HEAD_DIM, LATENT)
    v_up = np.asarray(params["Wv_up"], np.float64)   # (HIDDEN, LATENT)

    # fold k_up absorption into q:  W_q_eff[h, c, :] = sum_d k_up[h, d, c] * Wq[h*dh + d, :]
    W_q_eff = np.einsum("hdc,hdD->hcD", k_up, Wq.reshape(NUM_HEADS, HEAD_DIM, HIDDEN))
    # fold v_up into v: output column head*dh + d
    W_v_eff = v_up @ Wv                              # (HIDDEN, HIDDEN)

    # bake the rope de-interleave permutation (view(d//2,2).transpose) into weight rows
    perm = np.arange(LATENT)
    perm[:ROPE_DIM] = np.concatenate([np.arange(0, ROPE_DIM, 2), np.arange(1, ROPE_DIM, 2)])
    W_q_eff = W_q_eff[:, perm, :].reshape(NUM_HEADS * LATENT, HIDDEN)
    W_k_eff = Wk[perm, :]

    # single fused, lane-dense (padded to 128 output columns) projection weight
    W_qkv = np.zeros((QKV_PAD, HIDDEN), np.float64)
    W_qkv[:QKV_Q_COLS] = W_q_eff
    W_qkv[QKV_K_OFF:QKV_K_OFF + LATENT] = W_k_eff
    W_qkv[QKV_V_OFF:QKV_V_OFF + HIDDEN] = W_v_eff

    # o_proj weight pre-transposed once and zero-padded to 128 lanes (lane-dense store)
    Wo_T = np.zeros((HIDDEN, QKV_PAD), np.float64)
    Wo_T[:, :HIDDEN] = Wo.T

    # TODO(synk): cast to bf16 for the MXU (v6e/v7x) at production sizes.
    return dict(W_big_T=jnp.asarray(W_qkv.T.astype(np.float32)),   # (HIDDEN, 128)
                Wo_T=jnp.asarray(Wo_T.astype(np.float32)))          # (HIDDEN, 128)


def prepare_rope_tables(cos, sin):
    """Position-only cos / signed-sin tables over the fused qkv column layout.

    Built once outside the per-call path (positions are identical across batch, as
    produced by make_position_embeddings).  cos==1 / sin==0 outside the rope columns,
    so `qkv*cos + roll(qkv,+dh/2)*sin_p + roll(qkv,-dh/2)*sin_m` leaves nope / v / pad
    columns untouched; the rotate_half sign is baked into sin_m.
    """
    cos_c = np.asarray(cos)[0, :, ::COLLAPSE].astype(np.float64)   # (S, cd)
    sin_c = np.asarray(sin)[0, :, ::COLLAPSE].astype(np.float64)
    s, cd = cos_c.shape
    rep = ROPE_DIM // cd
    cos_rep = np.tile(cos_c, (1, rep))                              # (S, ROPE_DIM)
    sin_rep = np.tile(sin_c, (1, rep))

    cos_t = np.ones((s, QKV_PAD), np.float64)
    sin_p = np.zeros((s, QKV_PAD), np.float64)
    sin_m = np.zeros((s, QKV_PAD), np.float64)
    offsets = [h * LATENT for h in range(NUM_HEADS)] + [QKV_K_OFF]  # q heads + shared k
    for off in offsets:
        cos_t[:, off:off + ROPE_DIM] = cos_rep
        for g in range(ROPE_REP):
            lo = g * ROT_DH
            # first half of each rotate_half group: out = x*cos - x[c+dh/2]*sin
            sin_m[:, off + lo:off + lo + ROLL] = -sin_rep[:, lo:lo + ROLL]
            # second half:                         out = x*cos + x[c-dh/2]*sin
            sin_p[:, off + lo + ROLL:off + lo + ROT_DH] = sin_rep[:, lo + ROLL:lo + ROT_DH]

    b = np.asarray(cos).shape[0]
    tile = lambda t: jnp.asarray(np.tile(t, (b, 1)).astype(np.float32))  # (B*S, 128)
    return dict(cos=tile(cos_t), sin_p=tile(sin_p), sin_m=tile(sin_m))


# ------------------------------ parameter init -----------------------------
def init_params(key):
    ks = jax.random.split(key, 4)
    scale = 0.05
    Wq = jax.random.normal(ks[0], (NUM_HEADS * HEAD_DIM, HIDDEN), jnp.float32) * scale
    Wk = jax.random.normal(ks[1], (LATENT, HIDDEN), jnp.float32) * scale
    Wv = jax.random.normal(ks[2], (LATENT, HIDDEN), jnp.float32) * scale
    Wo = jax.random.normal(ks[3], (HIDDEN, NUM_HEADS * HEAD_DIM), jnp.float32) * scale
    # _insert_kv_up_proj with key_outputs=None: identity blocks repeated per KV group.
    eye = jnp.eye(LATENT, dtype=jnp.float32).reshape(NUM_KV_HEADS, HEAD_DIM, LATENT)
    up = jnp.stack([eye] * KV_GROUPS, axis=1).reshape(-1, LATENT)  # (HIDDEN, LATENT)
    return dict(Wq=Wq, Wk=Wk, Wv=Wv, Wo=Wo, Wk_up=up, Wv_up=up)


def make_position_embeddings(batch, seq, dim, base=10000.0):
    inv_freq = 1.0 / (base ** (jnp.arange(0, dim, 2, dtype=jnp.float32) / dim))
    t = jnp.arange(seq, dtype=jnp.float32)
    freqs = jnp.outer(t, inv_freq)
    emb = jnp.concatenate([freqs, freqs], axis=-1)  # (seq, dim)
    cos = jnp.broadcast_to(jnp.cos(emb)[None], (batch, seq, dim))
    sin = jnp.broadcast_to(jnp.sin(emb)[None], (batch, seq, dim))
    return cos, sin


# ------------------------------ pure-JAX reference ------------------------------
def _rotate_half_ref(x, group):
    parts = []
    dh = x.shape[-1] // group
    for i in range(group):
        parts.append(-x[..., i * dh + dh // 2:(i + 1) * dh])
        parts.append(x[..., i * dh:i * dh + dh // 2])
    return jnp.concatenate(parts, axis=-1)


def _apply_rope_ref(q, k, cos, sin, rope_head=1):
    rope_dim = cos.shape[-1] * rope_head
    q_rope, q_nope = q[..., :rope_dim], q[..., rope_dim:]
    k_rope, k_nope = k[..., :rope_dim], k[..., rope_dim:]
    cos = cos[:, None]
    sin = sin[:, None]

    def dei(x):
        bb, hh, ss, dd = x.shape
        return x.reshape(bb, hh, ss, dd // 2, 2).transpose(0, 1, 2, 4, 3).reshape(bb, hh, ss, dd)

    q_rope = dei(q_rope)
    k_rope = dei(k_rope)
    rep = q_rope.shape[-1] // cos.shape[-1]
    cos_r = jnp.tile(cos, (1, 1, 1, rep))
    sin_r = jnp.tile(sin, (1, 1, 1, rep))
    q_e = q_rope * cos_r + _rotate_half_ref(q_rope, rep) * sin_r
    k_e = k_rope * cos_r + _rotate_half_ref(k_rope, rep) * sin_r
    return (jnp.concatenate([q_e, q_nope], -1), jnp.concatenate([k_e, k_nope], -1))


def forward_reference(hidden, cos, sin, p):
    b, s, _ = hidden.shape
    q = hidden @ p["Wq"].T
    k = hidden @ p["Wk"].T
    v = hidden @ p["Wv"].T
    q = q.reshape(b, s, NUM_HEADS, HEAD_DIM)
    k_up = p["Wk_up"].reshape(NUM_HEADS, HEAD_DIM, LATENT)
    q = jnp.einsum("bthd,hdc->bhtc", q, k_up)
    k = k.reshape(b, 1, s, LATENT)
    v = v.reshape(b, 1, s, LATENT)
    q, k = _apply_rope_ref(q, k, cos[:, :, ::COLLAPSE], sin[:, :, ::COLLAPSE], ROPE_HEAD)
    v_up = p["Wv_up"].reshape(NUM_KV_HEADS, KV_GROUPS, HEAD_DIM, LATENT)
    v = jnp.einsum("btc,hgdc->bhgtd", v[:, 0], v_up).reshape(b, NUM_HEADS, s, HEAD_DIM)
    scores = jnp.einsum("bhqc,bkc->bhqk", q, k[:, 0]) * SCALING
    mask = jnp.tril(jnp.ones((s, s), dtype=bool))
    scores = jnp.where(mask, scores, -jnp.inf)
    p_attn = jax.nn.softmax(scores, axis=-1)
    o = jnp.einsum("bhqk,bhkd->bhqd", p_attn, v)
    o = o.transpose(0, 2, 1, 3).reshape(b, s, NUM_HEADS * HEAD_DIM)
    return o @ p["Wo"].T


# ------------------------------------ main ------------------------------------
if __name__ == "__main__":
    key = jax.random.PRNGKey(0)
    k_params, k_hidden = jax.random.split(key)
    params = init_params(k_params)
    prep = prepare_weights(params)                       # static, once per model
    hidden_states = jax.random.normal(k_hidden, (BATCH, SEQ, HIDDEN), jnp.float32)
    cos, sin = make_position_embeddings(BATCH, SEQ, COS_DIM)
    rope = prepare_rope_tables(cos, sin)                 # static, once per seq length

    fwd = jax.jit(partial_rope_forward)
    out = jax.block_until_ready(fwd(hidden_states, prep, rope))

    ref = forward_reference(hidden_states, cos, sin, params)
    # 1e-3: pl.reciprocal(approx=True) on the softmax denominator and the pre-composed
    # f64->f32 weights round slightly differently from the reference path.
    np.testing.assert_allclose(np.asarray(out), np.asarray(ref), rtol=1e-3, atol=1e-3)
    print("KERNEL_OK")
</pallas_src>

<mosaic_0001>
module attributes {stable_mosaic.version = 11 : i64} {
  func.func @_fused_partial_rope_kernel(%arg0: i32, %arg1: memref<16x32xf32, #tpu.memory_space<vmem>>, %arg2: memref<32x128xf32, #tpu.memory_space<vmem>>, %arg3: memref<32x128xf32, #tpu.memory_space<vmem>>, %arg4: memref<16x128xf32, #tpu.memory_space<vmem>>, %arg5: memref<16x128xf32, #tpu.memory_space<vmem>>, %arg6: memref<16x128xf32, #tpu.memory_space<vmem>>, %arg7: memref<16x128xf32, #tpu.memory_space<vmem>>) attributes {dimension_semantics = [#tpu.dimension_semantics<arbitrary>], iteration_bounds = array<i64: 1>, scalar_prefetch = 0 : i64, scratch_operands = 0 : i64, tpu.core_type = #tpu.core_type<tc>, window_params = [{pipeline_mode = #tpu.pipeline_mode<synchronous>, transform_indices = @transform_0, window_bounds = array<i64: 16, 32>}, {pipeline_mode = #tpu.pipeline_mode<synchronous>, transform_indices = @transform_1, window_bounds = array<i64: 32, 128>}, {pipeline_mode = #tpu.pipeline_mode<synchronous>, transform_indices = @transform_2, window_bounds = array<i64: 32, 128>}, {pipeline_mode = #tpu.pipeline_mode<synchronous>, transform_indices = @transform_3, window_bounds = array<i64: 16, 128>}, {pipeline_mode = #tpu.pipeline_mode<synchronous>, transform_indices = @transform_4, window_bounds = array<i64: 16, 128>}, {pipeline_mode = #tpu.pipeline_mode<synchronous>, transform_indices = @transform_5, window_bounds = array<i64: 16, 128>}, {pipeline_mode = #tpu.pipeline_mode<synchronous>, transform_indices = @transform_6, window_bounds = array<i64: 16, 128>}]} {
    %c0 = arith.constant 0 : index
    %c0_0 = arith.constant 0 : index
    %0 = vector.load %arg1[%c0, %c0_0] : memref<16x32xf32, #tpu.memory_space<vmem>>, vector<16x32xf32>
    %c0_1 = arith.constant 0 : index
    %c0_2 = arith.constant 0 : index
    %1 = vector.load %arg2[%c0_1, %c0_2] : memref<32x128xf32, #tpu.memory_space<vmem>>, vector<32x128xf32>
    %cst = arith.constant dense<0.000000e+00> : vector<16x128xf32>
    %2 = tpu.matmul %0, %1, %cst {dimension_numbers = #tpu.dot_dimension_numbers<[1], [0], [0], [1], [0, 0, 1, 1], [], []>} : vector<16x32xf32>, vector<32x128xf32>, vector<16x128xf32> -> vector<16x128xf32>
    %c4_i32 = arith.constant 4 : i32
    %3 = tpu.dynamic_rotate %2 by %c4_i32 dim 1 : vector<16x128xf32>, i32 -> vector<16x128xf32>
    %c124_i32 = arith.constant 124 : i32
    %4 = tpu.dynamic_rotate %2 by %c124_i32 dim 1 : vector<16x128xf32>, i32 -> vector<16x128xf32>
    %c0_3 = arith.constant 0 : index
    %c0_4 = arith.constant 0 : index
    %5 = vector.load %arg4[%c0_3, %c0_4] : memref<16x128xf32, #tpu.memory_space<vmem>>, vector<16x128xf32>
    %6 = arith.mulf %2, %5 : vector<16x128xf32>
    %c0_5 = arith.constant 0 : index
    %c0_6 = arith.constant 0 : index
    %7 = vector.load %arg5[%c0_5, %c0_6] : memref<16x128xf32, #tpu.memory_space<vmem>>, vector<16x128xf32>
    %8 = arith.mulf %3, %7 : vector<16x128xf32>
    %9 = arith.addf %6, %8 : vector<16x128xf32>
    %c0_7 = arith.constant 0 : index
    %c0_8 = arith.constant 0 : index
    %10 = vector.load %arg6[%c0_7, %c0_8] : memref<16x128xf32, #tpu.memory_space<vmem>>, vector<16x128xf32>
    %11 = arith.mulf %4, %10 : vector<16x128xf32>
    %12 = arith.addf %9, %11 : vector<16x128xf32>
    %13 = tpu.iota {dimensions = array<i32: 0>} : vector<8x8xi32>
    %14 = tpu.iota {dimensions = array<i32: 1>} : vector<8x8xi32>
    %15 = arith.cmpi sle, %14, %13 : vector<8x8xi32>
    %16 = vector.shape_cast %15 : vector<8x8xi1> to vector<1x8x8xi1>
    %c0_9 = arith.constant 0 : index
    %c0_10 = arith.constant 0 : index
    %17 = vector.load %arg3[%c0_9, %c0_10] : memref<32x128xf32, #tpu.memory_space<vmem>>, vector<32x128xf32>
    %18 = vector.extract_strided_slice %12 {offsets = [0, 0], sizes = [8, 128], strides = [1, 1]} : vector<16x128xf32> to vector<8x128xf32>
    %19 = vector.extract_strided_slice %18 {offsets = [0, 64], sizes = [8, 16], strides = [1, 1]} : vector<8x128xf32> to vector<8x16xf32>
    %20 = vector.extract_strided_slice %18 {offsets = [0, 0], sizes = [8, 16], strides = [1, 1]} : vector<8x128xf32> to vector<8x16xf32>
    %21 = vector.extract_strided_slice %18 {offsets = [0, 16], sizes = [8, 16], strides = [1, 1]} : vector<8x128xf32> to vector<8x16xf32>
    %22 = vector.extract_strided_slice %18 {offsets = [0, 32], sizes = [8, 16], strides = [1, 1]} : vector<8x128xf32> to vector<8x16xf32>
    %23 = vector.extract_strided_slice %18 {offsets = [0, 48], sizes = [8, 16], strides = [1, 1]} : vector<8x128xf32> to vector<8x16xf32>
    %24 = vector.shape_cast %20 : vector<8x16xf32> to vector<1x8x16xf32>
    %25 = vector.shape_cast %21 : vector<8x16xf32> to vector<1x8x16xf32>
    %26 = vector.shape_cast %22 : vector<8x16xf32> to vector<1x8x16xf32>
    %27 = vector.shape_cast %23 : vector<8x16xf32> to vector<1x8x16xf32>
    %28 = tpu.concatenate %24, %25, %26, %27 in 0 : vector<1x8x16xf32>, vector<1x8x16xf32>, vector<1x8x16xf32>, vector<1x8x16xf32> -> vector<4x8x16xf32>
    %29 = vector.extract_strided_slice %18 {offsets = [0, 80], sizes = [8, 8], strides = [1, 1]} : vector<8x128xf32> to vector<8x8xf32>
    %30 = vector.extract_strided_slice %18 {offsets = [0, 88], sizes = [8, 8], strides = [1, 1]} : vector<8x128xf32> to vector<8x8xf32>
    %31 = vector.extract_strided_slice %18 {offsets = [0, 96], sizes = [8, 8], strides = [1, 1]} : vector<8x128xf32> to vector<8x8xf32>
    %32 = vector.extract_strided_slice %18 {offsets = [0, 104], sizes = [8, 8], strides = [1, 1]} : vector<8x128xf32> to vector<8x8xf32>
    %33 = vector.shape_cast %29 : vector<8x8xf32> to vector<1x8x8xf32>
    %34 = vector.shape_cast %30 : vector<8x8xf32> to vector<1x8x8xf32>
    %35 = vector.shape_cast %31 : vector<8x8xf32> to vector<1x8x8xf32>
    %36 = vector.shape_cast %32 : vector<8x8xf32> to vector<1x8x8xf32>
    %37 = tpu.concatenate %33, %34, %35, %36 in 0 : vector<1x8x8xf32>, vector<1x8x8xf32>, vector<1x8x8xf32>, vector<1x8x8xf32> -> vector<4x8x8xf32>
    %38 = vector.shape_cast %19 : vector<8x16xf32> to vector<1x8x16xf32>
    %39 = vector.shape_cast %38 : vector<1x8x16xf32> to vector<1x8x16xf32>
    %40 = vector.broadcast %39 : vector<1x8x16xf32> to vector<4x8x16xf32>
    "tpu.trace_start"() <{level = 10 : i32, message = "hqc,hkc->hqk"}> : () -> ()
    %cst_11 = arith.constant dense<0.000000e+00> : vector<4x8x8xf32>
    %41 = tpu.matmul %28, %40, %cst_11 {dimension_numbers = #tpu.dot_dimension_numbers<[2], [2], [1], [1], [0, 0, 0, 1, 1, 1], [0], [0]>} : vector<4x8x16xf32>, vector<4x8x16xf32>, vector<4x8x8xf32> -> vector<4x8x8xf32>
    "tpu.trace_stop"() : () -> ()
    %cst_12 = arith.constant 0.353553385 : f32
    %42 = vector.broadcast %cst_12 : f32 to vector<4x8x8xf32>
    %43 = arith.mulf %41, %42 : vector<4x8x8xf32>
    %cst_13 = arith.constant -1.000000e+30 : f32
    %44 = vector.shape_cast %16 : vector<1x8x8xi1> to vector<1x8x8xi1>
    %45 = vector.broadcast %44 : vector<1x8x8xi1> to vector<4x8x8xi1>
    %46 = vector.broadcast %cst_13 : f32 to vector<4x8x8xf32>
    %47 = arith.select %45, %43, %46 : vector<4x8x8xi1>, vector<4x8x8xf32>
    %cst_14 = arith.constant dense<0xFF800000> : vector<4x8xf32>
    %48 = vector.multi_reduction <maximumf>, %47, %cst_14 [2] : vector<4x8x8xf32> to vector<4x8xf32>
    %49 = vector.shape_cast %48 : vector<4x8xf32> to vector<4x8x1xf32>
    %50 = vector.broadcast %49 : vector<4x8x1xf32> to vector<4x8x8xf32>
    %51 = arith.subf %47, %50 : vector<4x8x8xf32>
    %52 = math.exp %51 : vector<4x8x8xf32>
    %cst_15 = arith.constant dense<0.000000e+00> : vector<4x8xf32>
    %53 = vector.multi_reduction <add>, %52, %cst_15 [2] : vector<4x8x8xf32> to vector<4x8xf32>
    %54 = vector.shape_cast %53 : vector<4x8xf32> to vector<4x8x1xf32>
    "tpu.trace_start"() <{level = 10 : i32, message = "hqk,hkd->hqd"}> : () -> ()
    %cst_16 = arith.constant dense<0.000000e+00> : vector<4x8x8xf32>
    %55 = tpu.matmul %52, %37, %cst_16 {dimension_numbers = #tpu.dot_dimension_numbers<[2], [1], [1], [2], [0, 0, 0, 1, 1, 2], [0], [0]>} : vector<4x8x8xf32>, vector<4x8x8xf32>, vector<4x8x8xf32> -> vector<4x8x8xf32>
    "tpu.trace_stop"() : () -> ()
    %56 = tpu.reciprocal %54 {approx = true} : vector<4x8x1xf32> -> vector<4x8x1xf32>
    %57 = vector.broadcast %56 : vector<4x8x1xf32> to vector<4x8x8xf32>
    %58 = arith.mulf %55, %57 : vector<4x8x8xf32>
    %59 = vector.extract_strided_slice %58 {offsets = [0, 0, 0], sizes = [1, 8, 8], strides = [1, 1, 1]} : vector<4x8x8xf32> to vector<1x8x8xf32>
    %60 = vector.shape_cast %59 : vector<1x8x8xf32> to vector<8x8xf32>
    %61 = vector.extract_strided_slice %17 {offsets = [0, 0], sizes = [8, 128], strides = [1, 1]} : vector<32x128xf32> to vector<8x128xf32>
    %cst_17 = arith.constant dense<0.000000e+00> : vector<8x128xf32>
    %62 = tpu.matmul %60, %61, %cst_17 {dimension_numbers = #tpu.dot_dimension_numbers<[1], [0], [0], [1], [0, 0, 1, 1], [], []>} : vector<8x8xf32>, vector<8x128xf32>, vector<8x128xf32> -> vector<8x128xf32>
    %63 = vector.extract_strided_slice %58 {offsets = [1, 0, 0], sizes = [1, 8, 8], strides = [1, 1, 1]} : vector<4x8x8xf32> to vector<1x8x8xf32>
    %64 = vector.shape_cast %63 : vector<1x8x8xf32> to vector<8x8xf32>
    %65 = vector.extract_strided_slice %17 {offsets = [8, 0], sizes = [8, 128], strides = [1, 1]} : vector<32x128xf32> to vector<8x128xf32>
    %cst_18 = arith.constant dense<0.000000e+00> : vector<8x128xf32>
    %66 = tpu.matmul %64, %65, %cst_18 {dimension_numbers = #tpu.dot_dimension_numbers<[1], [0], [0], [1], [0, 0, 1, 1], [], []>} : vector<8x8xf32>, vector<8x128xf32>, vector<8x128xf32> -> vector<8x128xf32>
    %67 = arith.addf %62, %66 : vector<8x128xf32>
    %68 = vector.extract_strided_slice %58 {offsets = [2, 0, 0], sizes = [1, 8, 8], strides = [1, 1, 1]} : vector<4x8x8xf32> to vector<1x8x8xf32>
    %69 = vector.shape_cast %68 : vector<1x8x8xf32> to vector<8x8xf32>
    %70 = vector.extract_strided_slice %17 {offsets = [16, 0], sizes = [8, 128], strides = [1, 1]} : vector<32x128xf32> to vector<8x128xf32>
    %cst_19 = arith.constant dense<0.000000e+00> : vector<8x128xf32>
    %71 = tpu.matmul %69, %70, %cst_19 {dimension_numbers = #tpu.dot_dimension_numbers<[1], [0], [0], [1], [0, 0, 1, 1], [], []>} : vector<8x8xf32>, vector<8x128xf32>, vector<8x128xf32> -> vector<8x128xf32>
    %72 = arith.addf %67, %71 : vector<8x128xf32>
    %73 = vector.extract_strided_slice %58 {offsets = [3, 0, 0], sizes = [1, 8, 8], strides = [1, 1, 1]} : vector<4x8x8xf32> to vector<1x8x8xf32>
    %74 = vector.shape_cast %73 : vector<1x8x8xf32> to vector<8x8xf32>
    %75 = vector.extract_strided_slice %17 {offsets = [24, 0], sizes = [8, 128], strides = [1, 1]} : vector<32x128xf32> to vector<8x128xf32>
    %cst_20 = arith.constant dense<0.000000e+00> : vector<8x128xf32>
    %76 = tpu.matmul %74, %75, %cst_20 {dimension_numbers = #tpu.dot_dimension_numbers<[1], [0], [0], [1], [0, 0, 1, 1], [], []>} : vector<8x8xf32>, vector<8x128xf32>, vector<8x128xf32> -> vector<8x128xf32>
    %77 = arith.addf %72, %76 : vector<8x128xf32>
    %c0_21 = arith.constant 0 : index
    %c0_22 = arith.constant 0 : index
    %78 = vector.load %arg7[%c0_21, %c0_22] : memref<16x128xf32, #tpu.memory_space<vmem>>, vector<8x128xf32>
    tpu.vector_store %arg7[%c0_21, %c0_22], %77 {strides = array<i32>} : memref<16x128xf32, #tpu.memory_space<vmem>>, vector<8x128xf32>,
    %79 = vector.extract_strided_slice %12 {offsets = [8, 0], sizes = [8, 128], strides = [1, 1]} : vector<16x128xf32> to vector<8x128xf32>
    %80 = vector.extract_strided_slice %79 {offsets = [0, 64], sizes = [8, 16], strides = [1, 1]} : vector<8x128xf32> to vector<8x16xf32>
    %81 = vector.extract_strided_slice %79 {offsets = [0, 0], sizes = [8, 16], strides = [1, 1]} : vector<8x128xf32> to vector<8x16xf32>
    %82 = vector.extract_strided_slice %79 {offsets = [0, 16], sizes = [8, 16], strides = [1, 1]} : vector<8x128xf32> to vector<8x16xf32>
    %83 = vector.extract_strided_slice %79 {offsets = [0, 32], sizes = [8, 16], strides = [1, 1]} : vector<8x128xf32> to vector<8x16xf32>
    %84 = vector.extract_strided_slice %79 {offsets = [0, 48], sizes = [8, 16], strides = [1, 1]} : vector<8x128xf32> to vector<8x16xf32>
    %85 = vector.shape_cast %81 : vector<8x16xf32> to vector<1x8x16xf32>
    %86 = vector.shape_cast %82 : vector<8x16xf32> to vector<1x8x16xf32>
    %87 = vector.shape_cast %83 : vector<8x16xf32> to vector<1x8x16xf32>
    %88 = vector.shape_cast %84 : vector<8x16xf32> to vector<1x8x16xf32>
    %89 = tpu.concatenate %85, %86, %87, %88 in 0 : vector<1x8x16xf32>, vector<1x8x16xf32>, vector<1x8x16xf32>, vector<1x8x16xf32> -> vector<4x8x16xf32>
    %90 = vector.extract_strided_slice %79 {offsets = [0, 80], sizes = [8, 8], strides = [1, 1]} : vector<8x128xf32> to vector<8x8xf32>
    %91 = vector.extract_strided_slice %79 {offsets = [0, 88], sizes = [8, 8], strides = [1, 1]} : vector<8x128xf32> to vector<8x8xf32>
    %92 = vector.extract_strided_slice %79 {offsets = [0, 96], sizes = [8, 8], strides = [1, 1]} : vector<8x128xf32> to vector<8x8xf32>
    %93 = vector.extract_strided_slice %79 {offsets = [0, 104], sizes = [8, 8], strides = [1, 1]} : vector<8x128xf32> to vector<8x8xf32>
    %94 = vector.shape_cast %90 : vector<8x8xf32> to vector<1x8x8xf32>
    %95 = vector.shape_cast %91 : vector<8x8xf32> to vector<1x8x8xf32>
    %96 = vector.shape_cast %92 : vector<8x8xf32> to vector<1x8x8xf32>
    %97 = vector.shape_cast %93 : vector<8x8xf32> to vector<1x8x8xf32>
    %98 = tpu.concatenate %94, %95, %96, %97 in 0 : vector<1x8x8xf32>, vector<1x8x8xf32>, vector<1x8x8xf32>, vector<1x8x8xf32> -> vector<4x8x8xf32>
    %99 = vector.shape_cast %80 : vector<8x16xf32> to vector<1x8x16xf32>
    %100 = vector.shape_cast %99 : vector<1x8x16xf32> to vector<1x8x16xf32>
    %101 = vector.broadcast %100 : vector<1x8x16xf32> to vector<4x8x16xf32>
    "tpu.trace_start"() <{level = 10 : i32, message = "hqc,hkc->hqk"}> : () -> ()
    %cst_23 = arith.constant dense<0.000000e+00> : vector<4x8x8xf32>
    %102 = tpu.matmul %89, %101, %cst_23 {dimension_numbers = #tpu.dot_dimension_numbers<[2], [2], [1], [1], [0, 0, 0, 1, 1, 1], [0], [0]>} : vector<4x8x16xf32>, vector<4x8x16xf32>, vector<4x8x8xf32> -> vector<4x8x8xf32>
    "tpu.trace_stop"() : () -> ()
    %cst_24 = arith.constant 0.353553385 : f32
    %103 = vector.broadcast %cst_24 : f32 to vector<4x8x8xf32>
    %104 = arith.mulf %102, %103 : vector<4x8x8xf32>
    %cst_25 = arith.constant -1.000000e+30 : f32
    %105 = vector.shape_cast %16 : vector<1x8x8xi1> to vector<1x8x8xi1>
    %106 = vector.broadcast %105 : vector<1x8x8xi1> to vector<4x8x8xi1>
    %107 = vector.broadcast %cst_25 : f32 to vector<4x8x8xf32>
    %108 = arith.select %106, %104, %107 : vector<4x8x8xi1>, vector<4x8x8xf32>
    %cst_26 = arith.constant dense<0xFF800000> : vector<4x8xf32>
    %109 = vector.multi_reduction <maximumf>, %108, %cst_26 [2] : vector<4x8x8xf32> to vector<4x8xf32>
    %110 = vector.shape_cast %109 : vector<4x8xf32> to vector<4x8x1xf32>
    %111 = vector.broadcast %110 : vector<4x8x1xf32> to vector<4x8x8xf32>
    %112 = arith.subf %108, %111 : vector<4x8x8xf32>
    %113 = math.exp %112 : vector<4x8x8xf32>
    %cst_27 = arith.constant dense<0.000000e+00> : vector<4x8xf32>
    %114 = vector.multi_reduction <add>, %113, %cst_27 [2] : vector<4x8x8xf32> to vector<4x8xf32>
    %115 = vector.shape_cast %114 : vector<4x8xf32> to vector<4x8x1xf32>
    "tpu.trace_start"() <{level = 10 : i32, message = "hqk,hkd->hqd"}> : () -> ()
    %cst_28 = arith.constant dense<0.000000e+00> : vector<4x8x8xf32>
    %116 = tpu.matmul %113, %98, %cst_28 {dimension_numbers = #tpu.dot_dimension_numbers<[2], [1], [1], [2], [0, 0, 0, 1, 1, 2], [0], [0]>} : vector<4x8x8xf32>, vector<4x8x8xf32>, vector<4x8x8xf32> -> vector<4x8x8xf32>
    "tpu.trace_stop"() : () -> ()
    %117 = tpu.reciprocal %115 {approx = true} : vector<4x8x1xf32> -> vector<4x8x1xf32>
    %118 = vector.broadcast %117 : vector<4x8x1xf32> to vector<4x8x8xf32>
    %119 = arith.mulf %116, %118 : vector<4x8x8xf32>
    %120 = vector.extract_strided_slice %119 {offsets = [0, 0, 0], sizes = [1, 8, 8], strides = [1, 1, 1]} : vector<4x8x8xf32> to vector<1x8x8xf32>
    %121 = vector.shape_cast %120 : vector<1x8x8xf32> to vector<8x8xf32>
    %122 = vector.extract_strided_slice %17 {offsets = [0, 0], sizes = [8, 128], strides = [1, 1]} : vector<32x128xf32> to vector<8x128xf32>
    %cst_29 = arith.constant dense<0.000000e+00> : vector<8x128xf32>
    %123 = tpu.matmul %121, %122, %cst_29 {dimension_numbers = #tpu.dot_dimension_numbers<[1], [0], [0], [1], [0, 0, 1, 1], [], []>} : vector<8x8xf32>, vector<8x128xf32>, vector<8x128xf32> -> vector<8x128xf32>
    %124 = vector.extract_strided_slice %119 {offsets = [1, 0, 0], sizes = [1, 8, 8], strides = [1, 1, 1]} : vector<4x8x8xf32> to vector<1x8x8xf32>
    %125 = vector.shape_cast %124 : vector<1x8x8xf32> to vector<8x8xf32>
    %126 = vector.extract_strided_slice %17 {offsets = [8, 0], sizes = [8, 128], strides = [1, 1]} : vector<32x128xf32> to vector<8x128xf32>
    %cst_30 = arith.constant dense<0.000000e+00> : vector<8x128xf32>
    %127 = tpu.matmul %125, %126, %cst_30 {dimension_numbers = #tpu.dot_dimension_numbers<[1], [0], [0], [1], [0, 0, 1, 1], [], []>} : vector<8x8xf32>, vector<8x128xf32>, vector<8x128xf32> -> vector<8x128xf32>
    %128 = arith.addf %123, %127 : vector<8x128xf32>
    %129 = vector.extract_strided_slice %119 {offsets = [2, 0, 0], sizes = [1, 8, 8], strides = [1, 1, 1]} : vector<4x8x8xf32> to vector<1x8x8xf32>
    %130 = vector.shape_cast %129 : vector<1x8x8xf32> to vector<8x8xf32>
    %131 = vector.extract_strided_slice %17 {offsets = [16, 0], sizes = [8, 128], strides = [1, 1]} : vector<32x128xf32> to vector<8x128xf32>
    %cst_31 = arith.constant dense<0.000000e+00> : vector<8x128xf32>
    %132 = tpu.matmul %130, %131, %cst_31 {dimension_numbers = #tpu.dot_dimension_numbers<[1], [0], [0], [1], [0, 0, 1, 1], [], []>} : vector<8x8xf32>, vector<8x128xf32>, vector<8x128xf32> -> vector<8x128xf32>
    %133 = arith.addf %128, %132 : vector<8x128xf32>
    %134 = vector.extract_strided_slice %119 {offsets = [3, 0, 0], sizes = [1, 8, 8], strides = [1, 1, 1]} : vector<4x8x8xf32> to vector<1x8x8xf32>
    %135 = vector.shape_cast %134 : vector<1x8x8xf32> to vector<8x8xf32>
    %136 = vector.extract_strided_slice %17 {offsets = [24, 0], sizes = [8, 128], strides = [1, 1]} : vector<32x128xf32> to vector<8x128xf32>
    %cst_32 = arith.constant dense<0.000000e+00> : vector<8x128xf32>
    %137 = tpu.matmul %135, %136, %cst_32 {dimension_numbers = #tpu.dot_dimension_numbers<[1], [0], [0], [1], [0, 0, 1, 1], [], []>} : vector<8x8xf32>, vector<8x128xf32>, vector<8x128xf32> -> vector<8x128xf32>
    %138 = arith.addf %133, %137 : vector<8x128xf32>
    %c8 = arith.constant 8 : index
    %c0_33 = arith.constant 0 : index
    %139 = vector.load %arg7[%c8, %c0_33] : memref<16x128xf32, #tpu.memory_space<vmem>>, vector<8x128xf32>
    tpu.vector_store %arg7[%c8, %c0_33], %138 {strides = array<i32>} : memref<16x128xf32, #tpu.memory_space<vmem>>, vector<8x128xf32>,
    return
  }
  func.func @transform_0(%arg0: i32) -> (i32, i32) {
    %c0_i32 = arith.constant 0 : i32
    %c0_i32_0 = arith.constant 0 : i32
    %c0_i32_1 = arith.constant 0 : i32
    return %c0_i32, %c0_i32_0 : i32, i32
  }
  func.func @transform_1(%arg0: i32) -> (i32, i32) {
    %c0_i32 = arith.constant 0 : i32
    %c0_i32_0 = arith.constant 0 : i32
    %c0_i32_1 = arith.constant 0 : i32
    return %c0_i32, %c0_i32_0 : i32, i32
  }
  func.func @transform_2(%arg0: i32) -> (i32, i32) {
    %c0_i32 = arith.constant 0 : i32
    %c0_i32_0 = arith.constant 0 : i32
    %c0_i32_1 = arith.constant 0 : i32
    return %c0_i32, %c0_i32_0 : i32, i32
  }
  func.func @transform_3(%arg0: i32) -> (i32, i32) {
    %c0_i32 = arith.constant 0 : i32
    %c0_i32_0 = arith.constant 0 : i32
    %c0_i32_1 = arith.constant 0 : i32
    return %c0_i32, %c0_i32_0 : i32, i32
  }
  func.func @transform_4(%arg0: i32) -> (i32, i32) {
    %c0_i32 = arith.constant 0 : i32
    %c0_i32_0 = arith.constant 0 : i32
    %c0_i32_1 = arith.constant 0 : i32
    return %c0_i32, %c0_i32_0 : i32, i32
  }
  func.func @transform_5(%arg0: i32) -> (i32, i32) {
    %c0_i32 = arith.constant 0 : i32
    %c0_i32_0 = arith.constant 0 : i32
    %c0_i32_1 = arith.constant 0 : i32
    return %c0_i32, %c0_i32_0 : i32, i32
  }
  func.func @transform_6(%arg0: i32) -> (i32, i32) {
    %c0_i32 = arith.constant 0 : i32
    %c0_i32_0 = arith.constant 0 : i32
    %c0_i32_1 = arith.constant 0 : i32
    return %c0_i32, %c0_i32_0 : i32, i32
  }
}

</mosaic_0001>

<llo_original>
// kernel: partial_rope_forward.1
$region0: #{partial_rope_forward.1}
  #allocation0 [shape = 'u32[]', space=smem, size = 0x4, offset = 0x4, fixed_abs, tag = 'smem constant byte address 0x4 - core index']
  #allocation1 [shape = 'u32[72,128]{1,0:T(1,128)}', space=vmem, size = 0x9000, scoped, tag = 'internal scratch']
  %s0 = inlined_call_operand.hbm [shape: f32[16,32], index: 0, kind: input, shape index: {}]
  %s1 = inlined_call_operand.hbm [shape: f32[32,128], index: 1, kind: input, shape index: {}]
  %s2 = inlined_call_operand.hbm [shape: f32[32,128], index: 2, kind: input, shape index: {}]
  %s3 = inlined_call_operand.hbm [shape: f32[16,128], index: 3, kind: input, shape index: {}]
  %s4 = inlined_call_operand.hbm [shape: f32[16,128], index: 4, kind: input, shape index: {}]
  %s5 = inlined_call_operand.hbm [shape: f32[16,128], index: 5, kind: input, shape index: {}]
  %s6 = inlined_call_operand.vmem [shape: f32[16,128], index: 6, kind: output, shape index: {}]
  %s7 = sld [smem:[#allocation0]]
  $region58: #{partial_rope_forward.1} parent=0
    _
  %s9 = ssub.s32 1, %s7
  %s10 = scalar_select 0, %s9, %s7
  $region1: #{partial_rope_forward.1} parent=0
    #allocation2 [shape = 'u8[8192]{0}', space=vmem, size = 0x2000, scoped, tag = 'input window, operand 0, single buffered']
    #allocation3 [shape = 's32[1]{0}', space=sflag, size = 0x4, scoped, tag = 'scoped memory for partial_rope_forward.1']
    #allocation4 [shape = 'u8[16384]{0}', space=vmem, size = 0x4000, scoped, tag = 'input window, operand 1, single buffered']
    #allocation5 [shape = 's32[1]{0}', space=sflag, size = 0x4, scoped, tag = 'scoped memory for partial_rope_forward.1']
    #allocation6 [shape = 'u8[16384]{0}', space=vmem, size = 0x4000, scoped, tag = 'input window, operand 2, single buffered']
    #allocation7 [shape = 'u8[8192]{0}', space=vmem, size = 0x2000, scoped, tag = 'input window, operand 3, single buffered']
    #allocation8 [shape = 's32[1]{0}', space=sflag, size = 0x4, scoped, tag = 'scoped memory for partial_rope_forward.1']
    #allocation9 [shape = 'u8[8192]{0}', space=vmem, size = 0x2000, scoped, tag = 'input window, operand 4, single buffered']
    #allocation10 [shape = 'u8[8192]{0}', space=vmem, size = 0x2000, scoped, tag = 'input window, operand 5, single buffered']
    #allocation11 [shape = 's32[1]{0}', space=sflag, size = 0x4, scoped, tag = 'scoped memory for partial_rope_forward.1']
    %11 = vsyncpa [#allocation3], 0
    %12 = vsyncpa [#allocation5], 0
    %13 = vsyncpa [#allocation8], 0
    %14 = vsyncpa [#allocation11], 0
    // Predicated region
    $region2: #{partial_rope_forward.1} parent=1 // pred_check
      _
    $region3: #{partial_rope_forward.1} parent=1 // pred_check_branch
      %16 = sbr.rel (0) target = $region5
    $region4: #{partial_rope_forward.1} parent=1 // pred_region
      %18 = vsyncadd [#allocation3], 0
      %s19 = sshll.u32 %s0, 4
      %s20 = int_to_ptr.hbm [resolvable:$true] %s19
      %s21 = sshll.u32 [#allocation2], 4
      %s22 = int_to_ptr.vmem [resolvable:$true] %s21
      %27 = dma.hbm_to_vmem [thread:$0]  %s20, 256, %s22, [#allocation3], 128, 128, 8
    $region5: #{partial_rope_forward.1} parent=1 // pred_fallthru
      _
    // Predicated region
    $region6: #{partial_rope_forward.1} parent=1 // pred_check
      _
    $region7: #{partial_rope_forward.1} parent=1 // pred_check_branch
      %29 = sbr.rel (0) target = $region9
    $region8: #{partial_rope_forward.1} parent=1 // pred_region
      %31 = vsyncadd [#allocation5], 0
      %s32 = sshll.u32 %s1, 4
      %s33 = int_to_ptr.hbm [resolvable:$true] %s32
      %s34 = sshll.u32 [#allocation4], 4
      %s35 = int_to_ptr.vmem [resolvable:$true] %s34
      %40 = dma.hbm_to_vmem [thread:$0]  %s33, 512, %s35, [#allocation5], 128, 128, 8
    $region9: #{partial_rope_forward.1} parent=1 // pred_fallthru
      _
    // Predicated region
    $region10: #{partial_rope_forward.1} parent=1 // pred_check
      _
    $region11: #{partial_rope_forward.1} parent=1 // pred_check_branch
      %42 = sbr.rel (0) target = $region13
    $region12: #{partial_rope_forward.1} parent=1 // pred_region
      %44 = vsyncadd [#allocation5], 0
      %s45 = sshll.u32 %s2, 4
      %s46 = int_to_ptr.hbm [resolvable:$true] %s45
      %s47 = sshll.u32 [#allocation6], 4
      %s48 = int_to_ptr.vmem [resolvable:$true] %s47
      %53 = dma.hbm_to_vmem [thread:$0]  %s46, 512, %s48, [#allocation5], 128, 128, 8
    $region13: #{partial_rope_forward.1} parent=1 // pred_fallthru
      _
    // Predicated region
    $region14: #{partial_rope_forward.1} parent=1 // pred_check
      _
    $region15: #{partial_rope_forward.1} parent=1 // pred_check_branch
      %55 = sbr.rel (0) target = $region17
    $region16: #{partial_rope_forward.1} parent=1 // pred_region
      %57 = vsyncadd [#allocation8], 0
      %s58 = sshll.u32 %s3, 4
      %s59 = int_to_ptr.hbm [resolvable:$true] %s58
      %s60 = sshll.u32 [#allocation7], 4
      %s61 = int_to_ptr.vmem [resolvable:$true] %s60
      %66 = dma.hbm_to_vmem [thread:$0]  %s59, 256, %s61, [#allocation8], 128, 128, 8
    $region17: #{partial_rope_forward.1} parent=1 // pred_fallthru
      _
    // Predicated region
    $region18: #{partial_rope_forward.1} parent=1 // pred_check
      _
    $region19: #{partial_rope_forward.1} parent=1 // pred_check_branch
      %68 = sbr.rel (0) target = $region21
    $region20: #{partial_rope_forward.1} parent=1 // pred_region
      %70 = vsyncadd [#allocation8], 0
      %s71 = sshll.u32 %s4, 4
      %s72 = int_to_ptr.hbm [resolvable:$true] %s71
      %s73 = sshll.u32 [#allocation9], 4
      %s74 = int_to_ptr.vmem [resolvable:$true] %s73
      %79 = dma.hbm_to_vmem [thread:$0]  %s72, 256, %s74, [#allocation8], 128, 128, 8
    $region21: #{partial_rope_forward.1} parent=1 // pred_fallthru
      _
    // Predicated region
    $region22: #{partial_rope_forward.1} parent=1 // pred_check
      _
    $region23: #{partial_rope_forward.1} parent=1 // pred_check_branch
      %81 = sbr.rel (0) target = $region25
    $region24: #{partial_rope_forward.1} parent=1 // pred_region
      %83 = vsyncadd [#allocation11], 0
      %s84 = sshll.u32 %s5, 4
      %s85 = int_to_ptr.hbm [resolvable:$true] %s84
      %s86 = sshll.u32 [#allocation10], 4
      %s87 = int_to_ptr.vmem [resolvable:$true] %s86
      %92 = dma.hbm_to_vmem [thread:$0]  %s85, 256, %s87, [#allocation11], 128, 128, 8
    $region25: #{partial_rope_forward.1} parent=1 // pred_fallthru
      _
    // Predicated region
    $region26: #{partial_rope_forward.1} parent=1 // pred_check
      _
    $region27: #{partial_rope_forward.1} parent=1 // pred_check_branch
      %94 = sbr.rel (0) target = $region29
    $region28: #{partial_rope_forward.1} parent=1 // pred_region
      %96 = dma.done [#allocation3], 256
    $region29: #{partial_rope_forward.1} parent=1 // pred_fallthru
      _
    // Predicated region
    $region30: #{partial_rope_forward.1} parent=1 // pred_check
      _
    $region31: #{partial_rope_forward.1} parent=1 // pred_check_branch
      %98 = sbr.rel (0) target = $region33
    $region32: #{partial_rope_forward.1} parent=1 // pred_region
      %100 = dma.done [#allocation5], 512
    $region33: #{partial_rope_forward.1} parent=1 // pred_fallthru
      _
    // Predicated region
    $region34: #{partial_rope_forward.1} parent=1 // pred_check
      _
    $region35: #{partial_rope_forward.1} parent=1 // pred_check_branch
      %102 = sbr.rel (0) target = $region37
    $region36: #{partial_rope_forward.1} parent=1 // pred_region
      %104 = dma.done [#allocation5], 512
    $region37: #{partial_rope_forward.1} parent=1 // pred_fallthru
      _
    // Predicated region
    $region38: #{partial_rope_forward.1} parent=1 // pred_check
      _
    $region39: #{partial_rope_forward.1} parent=1 // pred_check_branch
      %106 = sbr.rel (0) target = $region41
    $region40: #{partial_rope_forward.1} parent=1 // pred_region
      %108 = dma.done [#allocation8], 256
    $region41: #{partial_rope_forward.1} parent=1 // pred_fallthru
      _
    // Predicated region
    $region42: #{partial_rope_forward.1} parent=1 // pred_check
      _
    $region43: #{partial_rope_forward.1} parent=1 // pred_check_branch
      %110 = sbr.rel (0) target = $region45
    $region44: #{partial_rope_forward.1} parent=1 // pred_region
      %112 = dma.done [#allocation8], 256
    $region45: #{partial_rope_forward.1} parent=1 // pred_fallthru
      _
    // Predicated region
    $region46: #{partial_rope_forward.1} parent=1 // pred_check
      _
    $region47: #{partial_rope_forward.1} parent=1 // pred_check_branch
      %114 = sbr.rel (0) target = $region49
    $region48: #{partial_rope_forward.1} parent=1 // pred_region
      %116 = dma.done [#allocation11], 256
    $region49: #{partial_rope_forward.1} parent=1 // pred_fallthru
      _
    %v117 = vld [vmem:[#allocation2] sm:$0xff]
    %v118 = vld [vmem:[#allocation2 + $0x8] sm:$0xff]
    %v119 = vld [vmem:[#allocation4] sm:$0xff]
    %v120 = vld [vmem:[#allocation4 + $0x8] sm:$0xff]
    %v121 = vld [vmem:[#allocation4 + $0x10] sm:$0xff]
    %v122 = vld [vmem:[#allocation4 + $0x18] sm:$0xff]
    %vm123 = vcmask 261120
    %v125 = vsel %vm123, %v117, 0
    %v128 = vsel %vm123, %v118, 0
    %130 = vmatpush.msra.mxu0 0.0
    %131 = vmatpush.msra.mxu0 0.0
    %132 = vmatpush.msra.mxu0 0.0
    %133 = vmatpush.msra.mxu0 0.0
    %134 = vmatpush.msra.mxu0 0.0
    %135 = vmatpush.msra.mxu0 0.0
    %136 = vmatpush.msra.mxu0 0.0
    %137 = vmatpush.msra.mxu0 0.0
    %138 = vmatpush.msra.mxu0 0.0
    %139 = vmatpush.msra.mxu0 0.0
    %140 = vmatpush.msra.mxu0 0.0
    %141 = vmatpush.msra.mxu0 0.0
    %142 = vmatpush.msra.mxu0 %v122
    %143 = vmatpush.msra.mxu0 %v121
    %144 = vmatpush.msra.mxu0 %v120
    %145 = vmatpush.msra.mxu0 %v119
    %146 = vmatmul.f32.gmra.mxu0 %v125
    %v147 = vpop.f32.mrf.mxu0
    %v148 = vadd.f32 0.0, %v147
    %149 = vmatmul.f32.gmra.mxu0 %v128
    %v150 = vpop.f32.mrf.mxu0
    %v151 = vadd.f32 0.0, %v150
    %152 = vdwg.mxu0
    %153 = vrot.lane.b32.xlu0 %v148, 4
    %v154 = vpop.permute.xlu0 %153
    %155 = vrot.lane.b32.xlu0 %v151, 4
    %v156 = vpop.permute.xlu0 %155
    %157 = vrot.lane.b32.xlu0 %v148, 124
    %v158 = vpop.permute.xlu0 %157
    %159 = vrot.lane.b32.xlu0 %v151, 124
    %v160 = vpop.permute.xlu0 %159
    %v161 = vld [vmem:[#allocation7] sm:$0xff]
    %v162 = vld [vmem:[#allocation7 + $0x8] sm:$0xff]
    %v163 = vmul.f32 %v148, %v161
    %v164 = vmul.f32 %v151, %v162
    %v165 = vld [vmem:[#allocation9] sm:$0xff]
    %v166 = vld [vmem:[#allocation9 + $0x8] sm:$0xff]
    %v167 = vmul.f32 %v154, %v165
    %v168 = vmul.f32 %v156, %v166
    %v169 = vadd.f32 %v163, %v167
    %v170 = vadd.f32 %v164, %v168
    %v171 = vld [vmem:[#allocation10] sm:$0xff]
    %v172 = vld [vmem:[#allocation10 + $0x8] sm:$0xff]
    %v173 = vmul.f32 %v158, %v171
    %v174 = vmul.f32 %v160, %v172
    %v175 = vadd.f32 %v169, %v173
    %v176 = vadd.f32 %v170, %v174
    %v177 = vlaneseq
    %v178 = vshrl.u32 %v177, 7
    %v179 = vlaneseq
    %v180 = vand.u32 %v179, 127
    %vm181 = vcmp.le.s32.totalorder %v180, %v178
    %v182 = vld [vmem:[#allocation6] sm:$0xff]
    %v183 = vld [vmem:[#allocation6 + $0x8] sm:$0xff]
    %v184 = vld [vmem:[#allocation6 + $0x10] sm:$0xff]
    %v185 = vld [vmem:[#allocation6 + $0x18] sm:$0xff]
    %187 = vrot.lane.b32.xlu0 %v175, 112
    %v188 = vpop.permute.xlu0 %187
    %189 = vrot.lane.b32.xlu0 %v175, 96
    %v190 = vpop.permute.xlu0 %189
    %191 = vrot.lane.b32.xlu0 %v175, 80
    %v192 = vpop.permute.xlu0 %191
    %193 = vrot.lane.b32.xlu0 %v175, 120
    %v194 = vpop.permute.xlu0 %193
    %195 = vrot.lane.b32.xlu0 %v175, 104
    %v196 = vpop.permute.xlu0 %195
    %197 = vrot.lane.b32.xlu0 %v175, 64
    %v198 = vpop.permute.xlu0 %197
    %vm199 = vcmask 130048
    %v200 = vsel %vm199, %v175, 0
    %v202 = vsel %vm199, %v198, 0
    %204 = vmatpush.xpose.msra.mxu0 0.0
    %205 = vmatpush.xpose.msra.mxu0 0.0
    %206 = vmatpush.xpose.msra.mxu0 0.0
    %207 = vmatpush.xpose.msra.mxu0 0.0
    %208 = vmatpush.xpose.msra.mxu0 0.0
    %209 = vmatpush.xpose.msra.mxu0 0.0
    %210 = vmatpush.xpose.msra.mxu0 0.0
    %211 = vmatpush.xpose.msra.mxu0 0.0
    %212 = vmatpush.xpose.msra.mxu0 0.0
    %213 = vmatpush.xpose.msra.mxu0 0.0
    %214 = vmatpush.xpose.msra.mxu0 0.0
    %215 = vmatpush.xpose.msra.mxu0 0.0
    %216 = vmatpush.xpose.msra.mxu0 0.0
    %217 = vmatpush.xpose.msra.mxu0 0.0
    %218 = vmatpush.xpose.msra.mxu0 0.0
    %219 = vmatpush.xpose.msra.mxu0 %v202
    %220 = vmatmul.f32.gmra.mxu0 %v200
    %v221 = vpop.f32.mrf.mxu0
    %v222 = vadd.f32 0.0, %v221
    %223 = vdwg.mxu0
    %v224 = vsel %vm199, %v188, 0
    %226 = vmatpush.xpose.msra.mxu0 0.0
    %227 = vmatpush.xpose.msra.mxu0 0.0
    %228 = vmatpush.xpose.msra.mxu0 0.0
    %229 = vmatpush.xpose.msra.mxu0 0.0
    %230 = vmatpush.xpose.msra.mxu0 0.0
    %231 = vmatpush.xpose.msra.mxu0 0.0
    %232 = vmatpush.xpose.msra.mxu0 0.0
    %233 = vmatpush.xpose.msra.mxu0 0.0
    %234 = vmatpush.xpose.msra.mxu0 0.0
    %235 = vmatpush.xpose.msra.mxu0 0.0
    %236 = vmatpush.xpose.msra.mxu0 0.0
    %237 = vmatpush.xpose.msra.mxu0 0.0
    %238 = vmatpush.xpose.msra.mxu0 0.0
    %239 = vmatpush.xpose.msra.mxu0 0.0
    %240 = vmatpush.xpose.msra.mxu0 0.0
    %241 = vmatpush.xpose.msra.mxu0 %v202
    %242 = vmatmul.f32.gmra.mxu0 %v224
    %v243 = vpop.f32.mrf.mxu0
    %v244 = vadd.f32 0.0, %v243
    %245 = vdwg.mxu0
    %v246 = vsel %vm199, %v190, 0
    %248 = vmatpush.xpose.msra.mxu0 0.0
    %249 = vmatpush.xpose.msra.mxu0 0.0
    %250 = vmatpush.xpose.msra.mxu0 0.0
    %251 = vmatpush.xpose.msra.mxu0 0.0
    %252 = vmatpush.xpose.msra.mxu0 0.0
    %253 = vmatpush.xpose.msra.mxu0 0.0
    %254 = vmatpush.xpose.msra.mxu0 0.0
    %255 = vmatpush.xpose.msra.mxu0 0.0
    %256 = vmatpush.xpose.msra.mxu0 0.0
    %257 = vmatpush.xpose.msra.mxu0 0.0
    %258 = vmatpush.xpose.msra.mxu0 0.0
    %259 = vmatpush.xpose.msra.mxu0 0.0
    %260 = vmatpush.xpose.msra.mxu0 0.0
    %261 = vmatpush.xpose.msra.mxu0 0.0
    %262 = vmatpush.xpose.msra.mxu0 0.0
    %263 = vmatpush.xpose.msra.mxu0 %v202
    %264 = vmatmul.f32.gmra.mxu0 %v246
    %v265 = vpop.f32.mrf.mxu0
    %v266 = vadd.f32 0.0, %v265
    %267 = vdwg.mxu0
    %v268 = vsel %vm199, %v192, 0
    %270 = vmatpush.xpose.msra.mxu0 0.0
    %271 = vmatpush.xpose.msra.mxu0 0.0
    %272 = vmatpush.xpose.msra.mxu0 0.0
    %273 = vmatpush.xpose.msra.mxu0 0.0
    %274 = vmatpush.xpose.msra.mxu0 0.0
    %275 = vmatpush.xpose.msra.mxu0 0.0
    %276 = vmatpush.xpose.msra.mxu0 0.0
    %277 = vmatpush.xpose.msra.mxu0 0.0
    %278 = vmatpush.xpose.msra.mxu0 0.0
    %279 = vmatpush.xpose.msra.mxu0 0.0
    %280 = vmatpush.xpose.msra.mxu0 0.0
    %281 = vmatpush.xpose.msra.mxu0 0.0
    %282 = vmatpush.xpose.msra.mxu0 0.0
    %283 = vmatpush.xpose.msra.mxu0 0.0
    %284 = vmatpush.xpose.msra.mxu0 0.0
    %285 = vmatpush.xpose.msra.mxu0 %v202
    %286 = vmatmul.f32.gmra.mxu0 %v268
    %v287 = vpop.f32.mrf.mxu0
    %v288 = vadd.f32 0.0, %v287
    %289 = vdwg.mxu0
    %v290 = vmul.f32 %v222, 0.35355338
    %v291 = vmul.f32 %v244, 0.35355338
    %v292 = vmul.f32 %v266, 0.35355338
    %v293 = vmul.f32 %v288, 0.35355338
    %v294 = vsel %vm181, 1, 0
    %vm295 = vcmp.eq.s32.totalorder %v294, 1
    %v296 = vsel %vm295, %v290, -1e+30
    %v297 = vsel %vm295, %v291, -1e+30
    %v298 = vsel %vm295, %v292, -1e+30
    %v299 = vsel %vm295, %v293, -1e+30
    %vm300 = vcmask 64512
    %v301 = vsel %vm300, %v296, -inf
    %302 = vmax.xlane.f32.xlu0 %v301
    %v303 = vpop.xlane.xlu0 %302
    %v304 = vsel %vm300, %v297, -inf
    %305 = vmax.xlane.f32.xlu0 %v304
    %v306 = vpop.xlane.xlu0 %305
    %v307 = vsel %vm300, %v298, -inf
    %308 = vmax.xlane.f32.xlu0 %v307
    %v309 = vpop.xlane.xlu0 %308
    %v310 = vsel %vm300, %v299, -inf
    %311 = vmax.xlane.f32.xlu0 %v310
    %v312 = vpop.xlane.xlu0 %311
    %v313 = vsub.f32 %v296, %v303
    %v314 = vsub.f32 %v297, %v306
    %v315 = vsub.f32 %v298, %v309
    %v316 = vsub.f32 %v299, %v312
    %v317 = vmul.f32 %v313, 1.442695
    %v318 = vpow.pop %v317
    %v319 = vmul.f32 %v314, 1.442695
    %v320 = vpow.pop %v319
    %v321 = vmul.f32 %v315, 1.442695
    %v322 = vpow.pop %v321
    %v323 = vmul.f32 %v316, 1.442695
    %v324 = vpow.pop %v323
    %v325 = vsel %vm300, %v318, 0.0
    %326 = vadd.xlane.f32.xlu0 %v325
    %v327 = vpop.xlane.xlu0 %326
    %v328 = vsel %vm300, %v320, 0.0
    %329 = vadd.xlane.f32.xlu0 %v328
    %v330 = vpop.xlane.xlu0 %329
    %v331 = vsel %vm300, %v322, 0.0
    %332 = vadd.xlane.f32.xlu0 %v331
    %v333 = vpop.xlane.xlu0 %332
    %v334 = vsel %vm300, %v324, 0.0
    %335 = vadd.xlane.f32.xlu0 %v334
    %v336 = vpop.xlane.xlu0 %335
    %337 = vrot.lane.b32.xlu0 %v175, 48
    %v338 = vpop.permute.xlu0 %337
    %v341 = vsel %vm300, %v318, 0
    %343 = vmatpush.msra.mxu0 0.0
    %344 = vmatpush.msra.mxu0 0.0
    %345 = vmatpush.msra.mxu0 0.0
    %346 = vmatpush.msra.mxu0 0.0
    %347 = vmatpush.msra.mxu0 0.0
    %348 = vmatpush.msra.mxu0 0.0
    %349 = vmatpush.msra.mxu0 0.0
    %350 = vmatpush.msra.mxu0 0.0
    %351 = vmatpush.msra.mxu0 0.0
    %352 = vmatpush.msra.mxu0 0.0
    %353 = vmatpush.msra.mxu0 0.0
    %354 = vmatpush.msra.mxu0 0.0
    %355 = vmatpush.msra.mxu0 0.0
    %356 = vmatpush.msra.mxu0 0.0
    %357 = vmatpush.msra.mxu0 0.0
    %358 = vmatpush.msra.mxu0 %v338
    %359 = vmatmul.f32.gmra.mxu0 %v341
    %v360 = vpop.f32.mrf.mxu0
    %v361 = vadd.f32 0.0, %v360
    %362 = vdwg.mxu0
    %363 = vrot.lane.b32.xlu0 %v194, 48
    %v364 = vpop.permute.xlu0 %363
    %v367 = vsel %vm300, %v320, 0
    %369 = vmatpush.msra.mxu0 0.0
    %370 = vmatpush.msra.mxu0 0.0
    %371 = vmatpush.msra.mxu0 0.0
    %372 = vmatpush.msra.mxu0 0.0
    %373 = vmatpush.msra.mxu0 0.0
    %374 = vmatpush.msra.mxu0 0.0
    %375 = vmatpush.msra.mxu0 0.0
    %376 = vmatpush.msra.mxu0 0.0
    %377 = vmatpush.msra.mxu0 0.0
    %378 = vmatpush.msra.mxu0 0.0
    %379 = vmatpush.msra.mxu0 0.0
    %380 = vmatpush.msra.mxu0 0.0
    %381 = vmatpush.msra.mxu0 0.0
    %382 = vmatpush.msra.mxu0 0.0
    %383 = vmatpush.msra.mxu0 0.0
    %384 = vmatpush.msra.mxu0 %v364
    %385 = vmatmul.f32.gmra.mxu0 %v367
    %v386 = vpop.f32.mrf.mxu0
    %v387 = vadd.f32 0.0, %v386
    %388 = vdwg.mxu0
    %389 = vrot.lane.b32.xlu0 %v188, 48
    %v390 = vpop.permute.xlu0 %389
    %v393 = vsel %vm300, %v322, 0
    %395 = vmatpush.msra.mxu0 0.0
    %396 = vmatpush.msra.mxu0 0.0
    %397 = vmatpush.msra.mxu0 0.0
    %398 = vmatpush.msra.mxu0 0.0
    %399 = vmatpush.msra.mxu0 0.0
    %400 = vmatpush.msra.mxu0 0.0
    %401 = vmatpush.msra.mxu0 0.0
    %402 = vmatpush.msra.mxu0 0.0
    %403 = vmatpush.msra.mxu0 0.0
    %404 = vmatpush.msra.mxu0 0.0
    %405 = vmatpush.msra.mxu0 0.0
    %406 = vmatpush.msra.mxu0 0.0
    %407 = vmatpush.msra.mxu0 0.0
    %408 = vmatpush.msra.mxu0 0.0
    %409 = vmatpush.msra.mxu0 0.0
    %410 = vmatpush.msra.mxu0 %v390
    %411 = vmatmul.f32.gmra.mxu0 %v393
    %v412 = vpop.f32.mrf.mxu0
    %v413 = vadd.f32 0.0, %v412
    %414 = vdwg.mxu0
    %415 = vrot.lane.b32.xlu0 %v196, 48
    %v416 = vpop.permute.xlu0 %415
    %v419 = vsel %vm300, %v324, 0
    %421 = vmatpush.msra.mxu0 0.0
    %422 = vmatpush.msra.mxu0 0.0
    %423 = vmatpush.msra.mxu0 0.0
    %424 = vmatpush.msra.mxu0 0.0
    %425 = vmatpush.msra.mxu0 0.0
    %426 = vmatpush.msra.mxu0 0.0
    %427 = vmatpush.msra.mxu0 0.0
    %428 = vmatpush.msra.mxu0 0.0
    %429 = vmatpush.msra.mxu0 0.0
    %430 = vmatpush.msra.mxu0 0.0
    %431 = vmatpush.msra.mxu0 0.0
    %432 = vmatpush.msra.mxu0 0.0
    %433 = vmatpush.msra.mxu0 0.0
    %434 = vmatpush.msra.mxu0 0.0
    %435 = vmatpush.msra.mxu0 0.0
    %436 = vmatpush.msra.mxu0 %v416
    %437 = vmatmul.f32.gmra.mxu0 %v419
    %v438 = vpop.f32.mrf.mxu0
    %v439 = vadd.f32 0.0, %v438
    %440 = vdwg.mxu0
    %v441 = vrcp.pop %v327
    %v442 = vrcp.pop %v330
    %v443 = vrcp.pop %v333
    %v444 = vrcp.pop %v336
    %v445 = vmul.f32 %v361, %v441
    %v446 = vmul.f32 %v387, %v442
    %v447 = vmul.f32 %v413, %v443
    %v448 = vmul.f32 %v439, %v444
    %v450 = vsel %vm300, %v446, 0
    %452 = vmatpush.msra.mxu0 0.0
    %453 = vmatpush.msra.mxu0 0.0
    %454 = vmatpush.msra.mxu0 0.0
    %455 = vmatpush.msra.mxu0 0.0
    %456 = vmatpush.msra.mxu0 0.0
    %457 = vmatpush.msra.mxu0 0.0
    %458 = vmatpush.msra.mxu0 0.0
    %459 = vmatpush.msra.mxu0 0.0
    %460 = vmatpush.msra.mxu0 0.0
    %461 = vmatpush.msra.mxu0 0.0
    %462 = vmatpush.msra.mxu0 0.0
    %463 = vmatpush.msra.mxu0 0.0
    %464 = vmatpush.msra.mxu0 0.0
    %465 = vmatpush.msra.mxu0 0.0
    %466 = vmatpush.msra.mxu0 0.0
    %467 = vmatpush.msra.mxu0 %v183
    %468 = vmatmul.f32.gmra.mxu0 %v450
    %v469 = vpop.f32.mrf.mxu0
    %v470 = vadd.f32 0.0, %v469
    %471 = vdwg.mxu0
    %v473 = vsel %vm300, %v445, 0
    %475 = vmatpush.msra.mxu0 0.0
    %476 = vmatpush.msra.mxu0 0.0
    %477 = vmatpush.msra.mxu0 0.0
    %478 = vmatpush.msra.mxu0 0.0
    %479 = vmatpush.msra.mxu0 0.0
    %480 = vmatpush.msra.mxu0 0.0
    %481 = vmatpush.msra.mxu0 0.0
    %482 = vmatpush.msra.mxu0 0.0
    %483 = vmatpush.msra.mxu0 0.0
    %484 = vmatpush.msra.mxu0 0.0
    %485 = vmatpush.msra.mxu0 0.0
    %486 = vmatpush.msra.mxu0 0.0
    %487 = vmatpush.msra.mxu0 0.0
    %488 = vmatpush.msra.mxu0 0.0
    %489 = vmatpush.msra.mxu0 0.0
    %490 = vmatpush.msra.mxu0 %v182
    %491 = vmatmul.f32.gmra.mxu0 %v473
    %v492 = vpop.f32.mrf.mxu0
    %v493 = vadd.f32 %v470, %v492
    %494 = vdwg.mxu0
    %v496 = vsel %vm300, %v447, 0
    %498 = vmatpush.msra.mxu0 0.0
    %499 = vmatpush.msra.mxu0 0.0
    %500 = vmatpush.msra.mxu0 0.0
    %501 = vmatpush.msra.mxu0 0.0
    %502 = vmatpush.msra.mxu0 0.0
    %503 = vmatpush.msra.mxu0 0.0
    %504 = vmatpush.msra.mxu0 0.0
    %505 = vmatpush.msra.mxu0 0.0
    %506 = vmatpush.msra.mxu0 0.0
    %507 = vmatpush.msra.mxu0 0.0
    %508 = vmatpush.msra.mxu0 0.0
    %509 = vmatpush.msra.mxu0 0.0
    %510 = vmatpush.msra.mxu0 0.0
    %511 = vmatpush.msra.mxu0 0.0
    %512 = vmatpush.msra.mxu0 0.0
    %513 = vmatpush.msra.mxu0 %v184
    %514 = vmatmul.f32.gmra.mxu0 %v496
    %v515 = vpop.f32.mrf.mxu0
    %v516 = vadd.f32 0.0, %v515
    %517 = vdwg.mxu0
    %v518 = vadd.f32 %v493, %v516
    %v520 = vsel %vm300, %v448, 0
    %522 = vmatpush.msra.mxu0 0.0
    %523 = vmatpush.msra.mxu0 0.0
    %524 = vmatpush.msra.mxu0 0.0
    %525 = vmatpush.msra.mxu0 0.0
    %526 = vmatpush.msra.mxu0 0.0
    %527 = vmatpush.msra.mxu0 0.0
    %528 = vmatpush.msra.mxu0 0.0
    %529 = vmatpush.msra.mxu0 0.0
    %530 = vmatpush.msra.mxu0 0.0
    %531 = vmatpush.msra.mxu0 0.0
    %532 = vmatpush.msra.mxu0 0.0
    %533 = vmatpush.msra.mxu0 0.0
    %534 = vmatpush.msra.mxu0 0.0
    %535 = vmatpush.msra.mxu0 0.0
    %536 = vmatpush.msra.mxu0 0.0
    %537 = vmatpush.msra.mxu0 %v185
    %538 = vmatmul.f32.gmra.mxu0 %v520
    %v539 = vpop.f32.mrf.mxu0
    %v540 = vadd.f32 0.0, %v539
    %541 = vdwg.mxu0
    %v542 = vadd.f32 %v518, %v540
    %543 = vst [vmem:[%s6] sm:$0xff] %v542
    %545 = vrot.lane.b32.xlu0 %v176, 112
    %v546 = vpop.permute.xlu0 %545
    %547 = vrot.lane.b32.xlu0 %v176, 96
    %v548 = vpop.permute.xlu0 %547
    %549 = vrot.lane.b32.xlu0 %v176, 80
    %v550 = vpop.permute.xlu0 %549
    %551 = vrot.lane.b32.xlu0 %v176, 120
    %v552 = vpop.permute.xlu0 %551
    %553 = vrot.lane.b32.xlu0 %v176, 104
    %v554 = vpop.permute.xlu0 %553
    %555 = vrot.lane.b32.xlu0 %v176, 64
    %v556 = vpop.permute.xlu0 %555
    %v557 = vsel %vm199, %v176, 0
    %v559 = vsel %vm199, %v556, 0
    %561 = vmatpush.xpose.msra.mxu0 0.0
    %562 = vmatpush.xpose.msra.mxu0 0.0
    %563 = vmatpush.xpose.msra.mxu0 0.0
    %564 = vmatpush.xpose.msra.mxu0 0.0
    %565 = vmatpush.xpose.msra.mxu0 0.0
    %566 = vmatpush.xpose.msra.mxu0 0.0
    %567 = vmatpush.xpose.msra.mxu0 0.0
    %568 = vmatpush.xpose.msra.mxu0 0.0
    %569 = vmatpush.xpose.msra.mxu0 0.0
    %570 = vmatpush.xpose.msra.mxu0 0.0
    %571 = vmatpush.xpose.msra.mxu0 0.0
    %572 = vmatpush.xpose.msra.mxu0 0.0
    %573 = vmatpush.xpose.msra.mxu0 0.0
    %574 = vmatpush.xpose.msra.mxu0 0.0
    %575 = vmatpush.xpose.msra.mxu0 0.0
    %576 = vmatpush.xpose.msra.mxu0 %v559
    %577 = vmatmul.f32.gmra.mxu0 %v557
    %v578 = vpop.f32.mrf.mxu0
    %v579 = vadd.f32 0.0, %v578
    %580 = vdwg.mxu0
    %v581 = vsel %vm199, %v546, 0
    %583 = vmatpush.xpose.msra.mxu0 0.0
    %584 = vmatpush.xpose.msra.mxu0 0.0
    %585 = vmatpush.xpose.msra.mxu0 0.0
    %586 = vmatpush.xpose.msra.mxu0 0.0
    %587 = vmatpush.xpose.msra.mxu0 0.0
    %588 = vmatpush.xpose.msra.mxu0 0.0
    %589 = vmatpush.xpose.msra.mxu0 0.0
    %590 = vmatpush.xpose.msra.mxu0 0.0
    %591 = vmatpush.xpose.msra.mxu0 0.0
    %592 = vmatpush.xpose.msra.mxu0 0.0
    %593 = vmatpush.xpose.msra.mxu0 0.0
    %594 = vmatpush.xpose.msra.mxu0 0.0
    %595 = vmatpush.xpose.msra.mxu0 0.0
    %596 = vmatpush.xpose.msra.mxu0 0.0
    %597 = vmatpush.xpose.msra.mxu0 0.0
    %598 = vmatpush.xpose.msra.mxu0 %v559
    %599 = vmatmul.f32.gmra.mxu0 %v581
    %v600 = vpop.f32.mrf.mxu0
    %v601 = vadd.f32 0.0, %v600
    %602 = vdwg.mxu0
    %v603 = vsel %vm199, %v548, 0
    %605 = vmatpush.xpose.msra.mxu0 0.0
    %606 = vmatpush.xpose.msra.mxu0 0.0
    %607 = vmatpush.xpose.msra.mxu0 0.0
    %608 = vmatpush.xpose.msra.mxu0 0.0
    %609 = vmatpush.xpose.msra.mxu0 0.0
    %610 = vmatpush.xpose.msra.mxu0 0.0
    %611 = vmatpush.xpose.msra.mxu0 0.0
    %612 = vmatpush.xpose.msra.mxu0 0.0
    %613 = vmatpush.xpose.msra.mxu0 0.0
    %614 = vmatpush.xpose.msra.mxu0 0.0
    %615 = vmatpush.xpose.msra.mxu0 0.0
    %616 = vmatpush.xpose.msra.mxu0 0.0
    %617 = vmatpush.xpose.msra.mxu0 0.0
    %618 = vmatpush.xpose.msra.mxu0 0.0
    %619 = vmatpush.xpose.msra.mxu0 0.0
    %620 = vmatpush.xpose.msra.mxu0 %v559
    %621 = vmatmul.f32.gmra.mxu0 %v603
    %v622 = vpop.f32.mrf.mxu0
    %v623 = vadd.f32 0.0, %v622
    %624 = vdwg.mxu0
    %v625 = vsel %vm199, %v550, 0
    %627 = vmatpush.xpose.msra.mxu0 0.0
    %628 = vmatpush.xpose.msra.mxu0 0.0
    %629 = vmatpush.xpose.msra.mxu0 0.0
    %630 = vmatpush.xpose.msra.mxu0 0.0
    %631 = vmatpush.xpose.msra.mxu0 0.0
    %632 = vmatpush.xpose.msra.mxu0 0.0
    %633 = vmatpush.xpose.msra.mxu0 0.0
    %634 = vmatpush.xpose.msra.mxu0 0.0
    %635 = vmatpush.xpose.msra.mxu0 0.0
    %636 = vmatpush.xpose.msra.mxu0 0.0
    %637 = vmatpush.xpose.msra.mxu0 0.0
    %638 = vmatpush.xpose.msra.mxu0 0.0
    %639 = vmatpush.xpose.msra.mxu0 0.0
    %640 = vmatpush.xpose.msra.mxu0 0.0
    %641 = vmatpush.xpose.msra.mxu0 0.0
    %642 = vmatpush.xpose.msra.mxu0 %v559
    %643 = vmatmul.f32.gmra.mxu0 %v625
    %v644 = vpop.f32.mrf.mxu0
    %v645 = vadd.f32 0.0, %v644
    %646 = vdwg.mxu0
    %v647 = vmul.f32 %v579, 0.35355338
    %v648 = vmul.f32 %v601, 0.35355338
    %v649 = vmul.f32 %v623, 0.35355338
    %v650 = vmul.f32 %v645, 0.35355338
    %v651 = vsel %vm295, %v647, -1e+30
    %v652 = vsel %vm295, %v648, -1e+30
    %v653 = vsel %vm295, %v649, -1e+30
    %v654 = vsel %vm295, %v650, -1e+30
    %v655 = vsel %vm300, %v651, -inf
    %656 = vmax.xlane.f32.xlu0 %v655
    %v657 = vpop.xlane.xlu0 %656
    %v658 = vsel %vm300, %v652, -inf
    %659 = vmax.xlane.f32.xlu0 %v658
    %v660 = vpop.xlane.xlu0 %659
    %v661 = vsel %vm300, %v653, -inf
    %662 = vmax.xlane.f32.xlu0 %v661
    %v663 = vpop.xlane.xlu0 %662
    %v664 = vsel %vm300, %v654, -inf
    %665 = vmax.xlane.f32.xlu0 %v664
    %v666 = vpop.xlane.xlu0 %665
    %v667 = vsub.f32 %v651, %v657
    %v668 = vsub.f32 %v652, %v660
    %v669 = vsub.f32 %v653, %v663
    %v670 = vsub.f32 %v654, %v666
    %v671 = vmul.f32 %v667, 1.442695
    %v672 = vpow.pop %v671
    %v673 = vmul.f32 %v668, 1.442695
    %v674 = vpow.pop %v673
    %v675 = vmul.f32 %v669, 1.442695
    %v676 = vpow.pop %v675
    %v677 = vmul.f32 %v670, 1.442695
    %v678 = vpow.pop %v677
    %v679 = vsel %vm300, %v672, 0.0
    %680 = vadd.xlane.f32.xlu0 %v679
    %v681 = vpop.xlane.xlu0 %680
    %v682 = vsel %vm300, %v674, 0.0
    %683 = vadd.xlane.f32.xlu0 %v682
    %v684 = vpop.xlane.xlu0 %683
    %v685 = vsel %vm300, %v676, 0.0
    %686 = vadd.xlane.f32.xlu0 %v685
    %v687 = vpop.xlane.xlu0 %686
    %v688 = vsel %vm300, %v678, 0.0
    %689 = vadd.xlane.f32.xlu0 %v688
    %v690 = vpop.xlane.xlu0 %689
    %691 = vrot.lane.b32.xlu0 %v176, 48
    %v692 = vpop.permute.xlu0 %691
    %v695 = vsel %vm300, %v672, 0
    %697 = vmatpush.msra.mxu0 0.0
    %698 = vmatpush.msra.mxu0 0.0
    %699 = vmatpush.msra.mxu0 0.0
    %700 = vmatpush.msra.mxu0 0.0
    %701 = vmatpush.msra.mxu0 0.0
    %702 = vmatpush.msra.mxu0 0.0
    %703 = vmatpush.msra.mxu0 0.0
    %704 = vmatpush.msra.mxu0 0.0
    %705 = vmatpush.msra.mxu0 0.0
    %706 = vmatpush.msra.mxu0 0.0
    %707 = vmatpush.msra.mxu0 0.0
    %708 = vmatpush.msra.mxu0 0.0
    %709 = vmatpush.msra.mxu0 0.0
    %710 = vmatpush.msra.mxu0 0.0
    %711 = vmatpush.msra.mxu0 0.0
    %712 = vmatpush.msra.mxu0 %v692
    %713 = vmatmul.f32.gmra.mxu0 %v695
    %v714 = vpop.f32.mrf.mxu0
    %v715 = vadd.f32 0.0, %v714
    %716 = vdwg.mxu0
    %717 = vrot.lane.b32.xlu0 %v552, 48
    %v718 = vpop.permute.xlu0 %717
    %v721 = vsel %vm300, %v674, 0
    %723 = vmatpush.msra.mxu0 0.0
    %724 = vmatpush.msra.mxu0 0.0
    %725 = vmatpush.msra.mxu0 0.0
    %726 = vmatpush.msra.mxu0 0.0
    %727 = vmatpush.msra.mxu0 0.0
    %728 = vmatpush.msra.mxu0 0.0
    %729 = vmatpush.msra.mxu0 0.0
    %730 = vmatpush.msra.mxu0 0.0
    %731 = vmatpush.msra.mxu0 0.0
    %732 = vmatpush.msra.mxu0 0.0
    %733 = vmatpush.msra.mxu0 0.0
    %734 = vmatpush.msra.mxu0 0.0
    %735 = vmatpush.msra.mxu0 0.0
    %736 = vmatpush.msra.mxu0 0.0
    %737 = vmatpush.msra.mxu0 0.0
    %738 = vmatpush.msra.mxu0 %v718
    %739 = vmatmul.f32.gmra.mxu0 %v721
    %v740 = vpop.f32.mrf.mxu0
    %v741 = vadd.f32 0.0, %v740
    %742 = vdwg.mxu0
    %743 = vrot.lane.b32.xlu0 %v546, 48
    %v744 = vpop.permute.xlu0 %743
    %v747 = vsel %vm300, %v676, 0
    %749 = vmatpush.msra.mxu0 0.0
    %750 = vmatpush.msra.mxu0 0.0
    %751 = vmatpush.msra.mxu0 0.0
    %752 = vmatpush.msra.mxu0 0.0
    %753 = vmatpush.msra.mxu0 0.0
    %754 = vmatpush.msra.mxu0 0.0
    %755 = vmatpush.msra.mxu0 0.0
    %756 = vmatpush.msra.mxu0 0.0
    %757 = vmatpush.msra.mxu0 0.0
    %758 = vmatpush.msra.mxu0 0.0
    %759 = vmatpush.msra.mxu0 0.0
    %760 = vmatpush.msra.mxu0 0.0
    %761 = vmatpush.msra.mxu0 0.0
    %762 = vmatpush.msra.mxu0 0.0
    %763 = vmatpush.msra.mxu0 0.0
    %764 = vmatpush.msra.mxu0 %v744
    %765 = vmatmul.f32.gmra.mxu0 %v747
    %v766 = vpop.f32.mrf.mxu0
    %v767 = vadd.f32 0.0, %v766
    %768 = vdwg.mxu0
    %769 = vrot.lane.b32.xlu0 %v554, 48
    %v770 = vpop.permute.xlu0 %769
    %v773 = vsel %vm300, %v678, 0
    %775 = vmatpush.msra.mxu0 0.0
    %776 = vmatpush.msra.mxu0 0.0
    %777 = vmatpush.msra.mxu0 0.0
    %778 = vmatpush.msra.mxu0 0.0
    %779 = vmatpush.msra.mxu0 0.0
    %780 = vmatpush.msra.mxu0 0.0
    %781 = vmatpush.msra.mxu0 0.0
    %782 = vmatpush.msra.mxu0 0.0
    %783 = vmatpush.msra.mxu0 0.0
    %784 = vmatpush.msra.mxu0 0.0
    %785 = vmatpush.msra.mxu0 0.0
    %786 = vmatpush.msra.mxu0 0.0
    %787 = vmatpush.msra.mxu0 0.0
    %788 = vmatpush.msra.mxu0 0.0
    %789 = vmatpush.msra.mxu0 0.0
    %790 = vmatpush.msra.mxu0 %v770
    %791 = vmatmul.f32.gmra.mxu0 %v773
    %v792 = vpop.f32.mrf.mxu0
    %v793 = vadd.f32 0.0, %v792
    %794 = vdwg.mxu0
    %v795 = vrcp.pop %v681
    %v796 = vrcp.pop %v684
    %v797 = vrcp.pop %v687
    %v798 = vrcp.pop %v690
    %v799 = vmul.f32 %v715, %v795
    %v800 = vmul.f32 %v741, %v796
    %v801 = vmul.f32 %v767, %v797
    %v802 = vmul.f32 %v793, %v798
    %v804 = vsel %vm300, %v800, 0
    %806 = vmatpush.msra.mxu0 0.0
    %807 = vmatpush.msra.mxu0 0.0
    %808 = vmatpush.msra.mxu0 0.0
    %809 = vmatpush.msra.mxu0 0.0
    %810 = vmatpush.msra.mxu0 0.0
    %811 = vmatpush.msra.mxu0 0.0
    %812 = vmatpush.msra.mxu0 0.0
    %813 = vmatpush.msra.mxu0 0.0
    %814 = vmatpush.msra.mxu0 0.0
    %815 = vmatpush.msra.mxu0 0.0
    %816 = vmatpush.msra.mxu0 0.0
    %817 = vmatpush.msra.mxu0 0.0
    %818 = vmatpush.msra.mxu0 0.0
    %819 = vmatpush.msra.mxu0 0.0
    %820 = vmatpush.msra.mxu0 0.0
    %821 = vmatpush.msra.mxu0 %v183
    %822 = vmatmul.f32.gmra.mxu0 %v804
    %v823 = vpop.f32.mrf.mxu0
    %v824 = vadd.f32 0.0, %v823
    %825 = vdwg.mxu0
    %v827 = vsel %vm300, %v799, 0
    %829 = vmatpush.msra.mxu0 0.0
    %830 = vmatpush.msra.mxu0 0.0
    %831 = vmatpush.msra.mxu0 0.0
    %832 = vmatpush.msra.mxu0 0.0
    %833 = vmatpush.msra.mxu0 0.0
    %834 = vmatpush.msra.mxu0 0.0
    %835 = vmatpush.msra.mxu0 0.0
    %836 = vmatpush.msra.mxu0 0.0
    %837 = vmatpush.msra.mxu0 0.0
    %838 = vmatpush.msra.mxu0 0.0
    %839 = vmatpush.msra.mxu0 0.0
    %840 = vmatpush.msra.mxu0 0.0
    %841 = vmatpush.msra.mxu0 0.0
    %842 = vmatpush.msra.mxu0 0.0
    %843 = vmatpush.msra.mxu0 0.0
    %844 = vmatpush.msra.mxu0 %v182
    %845 = vmatmul.f32.gmra.mxu0 %v827
    %v846 = vpop.f32.mrf.mxu0
    %v847 = vadd.f32 %v824, %v846
    %848 = vdwg.mxu0
    %v850 = vsel %vm300, %v801, 0
    %852 = vmatpush.msra.mxu0 0.0
    %853 = vmatpush.msra.mxu0 0.0
    %854 = vmatpush.msra.mxu0 0.0
    %855 = vmatpush.msra.mxu0 0.0
    %856 = vmatpush.msra.mxu0 0.0
    %857 = vmatpush.msra.mxu0 0.0
    %858 = vmatpush.msra.mxu0 0.0
    %859 = vmatpush.msra.mxu0 0.0
    %860 = vmatpush.msra.mxu0 0.0
    %861 = vmatpush.msra.mxu0 0.0
    %862 = vmatpush.msra.mxu0 0.0
    %863 = vmatpush.msra.mxu0 0.0
    %864 = vmatpush.msra.mxu0 0.0
    %865 = vmatpush.msra.mxu0 0.0
    %866 = vmatpush.msra.mxu0 0.0
    %867 = vmatpush.msra.mxu0 %v184
    %868 = vmatmul.f32.gmra.mxu0 %v850
    %v869 = vpop.f32.mrf.mxu0
    %v870 = vadd.f32 0.0, %v869
    %871 = vdwg.mxu0
    %v872 = vadd.f32 %v847, %v870
    %v874 = vsel %vm300, %v802, 0
    %876 = vmatpush.msra.mxu0 0.0
    %877 = vmatpush.msra.mxu0 0.0
    %878 = vmatpush.msra.mxu0 0.0
    %879 = vmatpush.msra.mxu0 0.0
    %880 = vmatpush.msra.mxu0 0.0
    %881 = vmatpush.msra.mxu0 0.0
    %882 = vmatpush.msra.mxu0 0.0
    %883 = vmatpush.msra.mxu0 0.0
    %884 = vmatpush.msra.mxu0 0.0
    %885 = vmatpush.msra.mxu0 0.0
    %886 = vmatpush.msra.mxu0 0.0
    %887 = vmatpush.msra.mxu0 0.0
    %888 = vmatpush.msra.mxu0 0.0
    %889 = vmatpush.msra.mxu0 0.0
    %890 = vmatpush.msra.mxu0 0.0
    %891 = vmatpush.msra.mxu0 %v185
    %892 = vmatmul.f32.gmra.mxu0 %v874
    %v893 = vpop.f32.mrf.mxu0
    %v894 = vadd.f32 0.0, %v893
    %895 = vdwg.mxu0
    %v896 = vadd.f32 %v872, %v894
    %897 = vst [vmem:[%s6 + $0x8] sm:$0xff] %v896
    // Predicated region
    $region50: #{partial_rope_forward.1} parent=1 // pred_check
      _
    $region51: #{partial_rope_forward.1} parent=1 // pred_check_branch
      %899 = sbr.rel (0) target = $region53
    $region52: #{partial_rope_forward.1} parent=1 // pred_region
      _
    $region53: #{partial_rope_forward.1} parent=1 // pred_fallthru
      _
    // Predicated region
    $region54: #{partial_rope_forward.1} parent=1 // pred_check
      _
    $region55: #{partial_rope_forward.1} parent=1 // pred_check_branch
      %901 = sbr.rel (0) target = $region57
    $region56: #{partial_rope_forward.1} parent=1 // pred_region
      _
    $region57: #{partial_rope_forward.1} parent=1 // pred_fallthru
      _
    %902 = vsyncpa [#allocation3], 1
    %903 = vsyncpa [#allocation5], 1
    %904 = vsyncpa [#allocation8], 1
    %905 = vsyncpa [#allocation11], 1

</llo_original>
